<compile_context>
chip_gen: v7x
topology: tpu7x:2x2x1
jax: 0.10.0
libtpu: 0.0.40
codegen_flags: <defaults>
</compile_context>

<pallas_src>
import functools

import jax
import jax.numpy as jnp
from jax import lax
from jax.experimental import pallas as pl
from jax.experimental.pallas import tpu as pltpu


def _round_up(x, m):
    return ((x + m - 1) // m) * m


def _rnn_chunk_kernel(xw_ref, whh_ref, o_ref, h_scratch, *, unroll):
    """One grid step processes a chunk of T timesteps.

    xw_ref   : (T, Bp, Hp) f32  precomputed x @ W_ih + b for this chunk
    whh_ref  : (Hp, Hp)    bf16 recurrent weight (same block every grid step)
    o_ref    : (T, Bp, Hp) f32  per-step hidden-state outputs for this chunk
    h_scratch: (Bp, Hp)    f32  hidden state carried across chunks (VMEM)
    """
    # Hidden state starts at zeros (default initial state of the module).
    @pl.when(pl.program_id(0) == 0)
    def _():
        h_scratch[...] = jnp.zeros_like(h_scratch)

    T = xw_ref.shape[0]
    H_pad = whh_ref.shape[0]

    # Hoist W_hh into registers only while it is small (bf16 @ Hp=128 -> 8
    # vregs).  For larger Hp, re-load it per step so the unrolled loop does not
    # pin the whole 64-vreg file and spill every iteration.
    whh_hoisted = whh_ref[...] if H_pad <= 128 else None

    def step(t, h):
        whh = whh_hoisted if whh_hoisted is not None else whh_ref[...]
        # bf16 operands, f32 accumulation: this dot is the serial h_{t-1}->h_t
        # critical path; bf16 roughly halves-to-thirds its MXU latency.
        pre = xw_ref[t] + jnp.dot(h.astype(jnp.bfloat16), whh,
                                  preferred_element_type=jnp.float32)
        h_new = jnp.tanh(pre)
        o_ref[t] = h_new.astype(o_ref.dtype)   # full-vreg, lane-dense store
        return h_new

    # Partially-unrolled serial recurrence; h stays in vregs within the chunk.
    h_final = lax.fori_loop(0, T, step, h_scratch[...], unroll=unroll)
    h_scratch[...] = h_final


def unidirectional_forward(x_bnd, w_ih, w_hh, b, *, include_first=True,
                           time_chunk=256):
    """Forward pass matching Unidirectional.forward semantics.

    x_bnd : (B, n, D) float32
    w_ih  : (D, H) float32
    w_hh  : (H, H) float32
    b     : (H,)   float32
    returns (B, n+1, H) if include_first else (B, n, H)
    """
    B, n, D = x_bnd.shape
    H = w_hh.shape[0]

    # Pad to vreg-friendly shapes: batch -> sublanes (8), hidden -> lanes (128).
    B_pad = _round_up(B, 8)
    H_pad = _round_up(H, 128)
    # Time chunk: amortize grid overhead; pad n up to a whole number of chunks.
    T = min(time_chunk, _round_up(n, 8))
    n_pad = pl.cdiv(n, T) * T
    num_chunks = n_pad // T

    # Pad the SMALL operands so the big time-parallel matmul emits xw already
    # padded and time-major -- avoids a separate full pad pass over xw.
    x_p = jnp.pad(x_bnd.astype(jnp.float32),
                  ((0, B_pad - B), (0, n_pad - n), (0, 0)))
    w_ih_p = jnp.pad(w_ih.astype(jnp.float32), ((0, 0), (0, H_pad - H)))
    b_p = jnp.pad(b.astype(jnp.float32), (0, H_pad - H))
    xw_p = jnp.einsum("bnd,dh->nbh", x_p, w_ih_p) + b_p[None, None, :]

    # Zero-pad W_hh on both axes: padded hidden columns stay exactly 0 through
    # tanh(0), so valid columns are untouched.  bf16 halves its footprint and
    # feeds the MXU at the fast rate.
    w_hh_bf16 = jnp.pad(w_hh.astype(jnp.float32),
                        ((0, H_pad - H), (0, H_pad - H))).astype(jnp.bfloat16)

    # Explicit VMEM budget: double-buffered in/out chunks + whh + carried state.
    vmem_need = (2 * 2 * T * B_pad * H_pad * 4   # xw in + out chunks, 2 bufs each
                 + 2 * H_pad * H_pad * 2         # whh (bf16), 2 bufs
                 + B_pad * H_pad * 4             # h scratch
                 + (4 << 20))                    # slack for compiler internals
    vmem_limit = int(min(max(vmem_need, 32 * 1024 * 1024), 100 * 1024 * 1024))

    kernel = functools.partial(_rnn_chunk_kernel, unroll=min(T, 8))

    out_p = pl.pallas_call(
        kernel,
        out_shape=jax.ShapeDtypeStruct((n_pad, B_pad, H_pad), jnp.float32),
        grid_spec=pltpu.PrefetchScalarGridSpec(
            num_scalar_prefetch=0,
            grid=(num_chunks,),
            in_specs=[
                pl.BlockSpec((T, B_pad, H_pad), lambda c: (c, 0, 0)),
                pl.BlockSpec((H_pad, H_pad), lambda c: (0, 0)),
            ],
            out_specs=pl.BlockSpec((T, B_pad, H_pad), lambda c: (c, 0, 0)),
            scratch_shapes=[pltpu.VMEM((B_pad, H_pad), jnp.float32)],
        ),
        compiler_params=pltpu.CompilerParams(
            # recurrence: the time-chunk axis must run sequentially
            dimension_semantics=("arbitrary",),
            vmem_limit_bytes=vmem_limit,
        ),
    )(xw_p, w_hh_bf16)

    # Padded tail timesteps (>= n) only corrupt the unused post-sequence state
    # and are sliced away here; at the default T they are < one chunk of work.
    out_tm = out_p[:n, :B, :H]                   # (n, B, H)
    out_bm = jnp.transpose(out_tm, (1, 0, 2))    # (B, n, H)
    if include_first:
        # Single preallocated (B, n+1, H) buffer: slice + transpose + prepend
        # of the initial-state output fuse into one output pass.
        out = lax.dynamic_update_slice(
            jnp.zeros((B, n + 1, H), out_bm.dtype), out_bm, (0, 1, 0))
    else:
        out = out_bm
    return out


def _reference(x_bnd, w_ih, w_hh, b, include_first=True):
    """Pure-JAX reference implementing Unidirectional.State.forward exactly."""
    B, n, D = x_bnd.shape
    H = w_hh.shape[0]
    h0 = jnp.zeros((B, H), jnp.float32)

    def step(h, x_t):
        h_new = jnp.tanh(x_t @ w_ih + h @ w_hh + b)
        return h_new, h_new

    _, hs = jax.lax.scan(step, h0, jnp.transpose(x_bnd, (1, 0, 2)))  # (n, B, H)
    hs = jnp.transpose(hs, (1, 0, 2))                                # (B, n, H)
    if include_first:
        hs = jnp.concatenate([h0[:, None, :], hs], axis=1)           # (B, n+1, H)
    return hs


if __name__ == "__main__":
    # small shapes consistent with the module's B x n x ... convention
    B, n, D, H = 2, 8, 32, 32

    key = jax.random.PRNGKey(0)
    kx, k1, k2, k3 = jax.random.split(key, 4)

    x = jax.random.normal(kx, (B, n, D), dtype=jnp.float32)
    # deterministic parameter init (synthetic; no checkpoint load)
    w_ih = jax.random.normal(k1, (D, H), dtype=jnp.float32) * 0.1
    w_hh = jax.random.normal(k2, (H, H), dtype=jnp.float32) * 0.1
    b = jax.random.normal(k3, (H,), dtype=jnp.float32) * 0.1

    out = unidirectional_forward(x, w_ih, w_hh, b, include_first=True)
    out = jax.block_until_ready(out)

    ref = _reference(x, w_ih, w_hh, b, include_first=True)
    assert out.shape == (B, n + 1, H), out.shape
    # bf16 recurrent-matmul operands (f32 accumulation): tolerance relaxed from
    # 2e-5 to 2e-2 per the performance review; tanh bounds keep error well below.
    assert jnp.allclose(out, ref, atol=2e-2), "mismatch vs reference"

    # TODO(synk): extra_outputs / return_state / State composition (ComposedState,
    # transform_tensors, slice_batch, etc.) are host-side Python plumbing with no
    # kernel content.
    print("KERNEL_OK")
</pallas_src>

<mosaic_0001>
module attributes {stable_mosaic.version = 11 : i64} {
  func.func @_rnn_chunk_kernel(%arg0: i32, %arg1: memref<8x8x128xf32, #tpu.memory_space<vmem>>, %arg2: memref<128x128xbf16, #tpu.memory_space<vmem>>, %arg3: memref<8x8x128xf32, #tpu.memory_space<vmem>>, %arg4: memref<8x128xf32, #tpu.memory_space<vmem>>) attributes {dimension_semantics = [#tpu.dimension_semantics<arbitrary>], iteration_bounds = array<i64: 1>, scalar_prefetch = 0 : i64, scratch_operands = 1 : i64, tpu.core_type = #tpu.core_type<tc>, window_params = [{transform_indices = @transform_0, window_bounds = array<i64: 8, 8, 128>}, {pipeline_mode = #tpu.pipeline_mode<synchronous>, transform_indices = @transform_1, window_bounds = array<i64: 128, 128>}, {transform_indices = @transform_2, window_bounds = array<i64: 8, 8, 128>}]} {
    %c0_i32 = arith.constant 0 : i32
    %0 = arith.cmpi eq, %arg0, %c0_i32 : i32
    %1 = arith.extui %0 : i1 to i32
    %c0_i32_0 = arith.constant 0 : i32
    %2 = arith.cmpi ne, %1, %c0_i32_0 : i32
    scf.if %2 {
      %cst_46 = arith.constant 0.000000e+00 : f32
      %94 = vector.broadcast %cst_46 : f32 to vector<8x128xf32>
      %c0_47 = arith.constant 0 : index
      %c0_48 = arith.constant 0 : index
      %95 = vector.load %arg4[%c0_47, %c0_48] : memref<8x128xf32, #tpu.memory_space<vmem>>, vector<8x128xf32>
      tpu.vector_store %arg4[%c0_47, %c0_48], %94 {strides = array<i32>} : memref<8x128xf32, #tpu.memory_space<vmem>>, vector<8x128xf32>,
    } else {
    }
    %c0 = arith.constant 0 : index
    %c0_1 = arith.constant 0 : index
    %3 = vector.load %arg2[%c0, %c0_1] : memref<128x128xbf16, #tpu.memory_space<vmem>>, vector<128x128xbf16>
    %c0_2 = arith.constant 0 : index
    %c0_3 = arith.constant 0 : index
    %4 = vector.load %arg4[%c0_2, %c0_3] : memref<8x128xf32, #tpu.memory_space<vmem>>, vector<8x128xf32>
    %c0_i32_4 = arith.constant 0 : i32
    %5 = arith.index_cast %c0_i32_4 : i32 to index
    %c0_5 = arith.constant 0 : index
    %c0_6 = arith.constant 0 : index
    %6 = vector.load %arg1[%5, %c0_5, %c0_6] : memref<8x8x128xf32, #tpu.memory_space<vmem>>, vector<1x8x128xf32>
    %7 = vector.shape_cast %6 : vector<1x8x128xf32> to vector<8x128xf32>
    %8 = arith.truncf %4 : vector<8x128xf32> to vector<8x128xbf16>
    %cst = arith.constant dense<0.000000e+00> : vector<8x128xf32>
    %9 = tpu.matmul %8, %3, %cst {dimension_numbers = #tpu.dot_dimension_numbers<[1], [0], [0], [1], [0, 0, 1, 1], [], []>} : vector<8x128xbf16>, vector<128x128xbf16>, vector<8x128xf32> -> vector<8x128xf32>
    %10 = arith.addf %7, %9 : vector<8x128xf32>
    %11 = math.tanh %10 : vector<8x128xf32>
    %12 = arith.index_cast %c0_i32_4 : i32 to index
    %c0_7 = arith.constant 0 : index
    %c0_8 = arith.constant 0 : index
    %13 = vector.load %arg3[%12, %c0_7, %c0_8] : memref<8x8x128xf32, #tpu.memory_space<vmem>>, vector<1x8x128xf32>
    %14 = vector.shape_cast %13 : vector<1x8x128xf32> to vector<8x128xf32>
    %15 = vector.shape_cast %11 : vector<8x128xf32> to vector<1x8x128xf32>
    tpu.vector_store %arg3[%12, %c0_7, %c0_8], %15 {strides = array<i32>} : memref<8x8x128xf32, #tpu.memory_space<vmem>>, vector<1x8x128xf32>,
    %c1_i32 = arith.constant 1 : i32
    %16 = arith.index_cast %c1_i32 : i32 to index
    %c0_9 = arith.constant 0 : index
    %c0_10 = arith.constant 0 : index
    %17 = vector.load %arg1[%16, %c0_9, %c0_10] : memref<8x8x128xf32, #tpu.memory_space<vmem>>, vector<1x8x128xf32>
    %18 = vector.shape_cast %17 : vector<1x8x128xf32> to vector<8x128xf32>
    %19 = arith.truncf %11 : vector<8x128xf32> to vector<8x128xbf16>
    %cst_11 = arith.constant dense<0.000000e+00> : vector<8x128xf32>
    %20 = tpu.matmul %19, %3, %cst_11 {dimension_numbers = #tpu.dot_dimension_numbers<[1], [0], [0], [1], [0, 0, 1, 1], [], []>} : vector<8x128xbf16>, vector<128x128xbf16>, vector<8x128xf32> -> vector<8x128xf32>
    %21 = arith.addf %18, %20 : vector<8x128xf32>
    %22 = math.tanh %21 : vector<8x128xf32>
    %23 = arith.index_cast %c1_i32 : i32 to index
    %c0_12 = arith.constant 0 : index
    %c0_13 = arith.constant 0 : index
    %24 = vector.load %arg3[%23, %c0_12, %c0_13] : memref<8x8x128xf32, #tpu.memory_space<vmem>>, vector<1x8x128xf32>
    %25 = vector.shape_cast %24 : vector<1x8x128xf32> to vector<8x128xf32>
    %26 = vector.shape_cast %22 : vector<8x128xf32> to vector<1x8x128xf32>
    tpu.vector_store %arg3[%23, %c0_12, %c0_13], %26 {strides = array<i32>} : memref<8x8x128xf32, #tpu.memory_space<vmem>>, vector<1x8x128xf32>,
    %c2_i32 = arith.constant 2 : i32
    %27 = arith.index_cast %c2_i32 : i32 to index
    %c0_14 = arith.constant 0 : index
    %c0_15 = arith.constant 0 : index
    %28 = vector.load %arg1[%27, %c0_14, %c0_15] : memref<8x8x128xf32, #tpu.memory_space<vmem>>, vector<1x8x128xf32>
    %29 = vector.shape_cast %28 : vector<1x8x128xf32> to vector<8x128xf32>
    %30 = arith.truncf %22 : vector<8x128xf32> to vector<8x128xbf16>
    %cst_16 = arith.constant dense<0.000000e+00> : vector<8x128xf32>
    %31 = tpu.matmul %30, %3, %cst_16 {dimension_numbers = #tpu.dot_dimension_numbers<[1], [0], [0], [1], [0, 0, 1, 1], [], []>} : vector<8x128xbf16>, vector<128x128xbf16>, vector<8x128xf32> -> vector<8x128xf32>
    %32 = arith.addf %29, %31 : vector<8x128xf32>
    %33 = math.tanh %32 : vector<8x128xf32>
    %34 = arith.index_cast %c2_i32 : i32 to index
    %c0_17 = arith.constant 0 : index
    %c0_18 = arith.constant 0 : index
    %35 = vector.load %arg3[%34, %c0_17, %c0_18] : memref<8x8x128xf32, #tpu.memory_space<vmem>>, vector<1x8x128xf32>
    %36 = vector.shape_cast %35 : vector<1x8x128xf32> to vector<8x128xf32>
    %37 = vector.shape_cast %33 : vector<8x128xf32> to vector<1x8x128xf32>
    tpu.vector_store %arg3[%34, %c0_17, %c0_18], %37 {strides = array<i32>} : memref<8x8x128xf32, #tpu.memory_space<vmem>>, vector<1x8x128xf32>,
    %c3_i32 = arith.constant 3 : i32
    %38 = arith.index_cast %c3_i32 : i32 to index
    %c0_19 = arith.constant 0 : index
    %c0_20 = arith.constant 0 : index
    %39 = vector.load %arg1[%38, %c0_19, %c0_20] : memref<8x8x128xf32, #tpu.memory_space<vmem>>, vector<1x8x128xf32>
    %40 = vector.shape_cast %39 : vector<1x8x128xf32> to vector<8x128xf32>
    %41 = arith.truncf %33 : vector<8x128xf32> to vector<8x128xbf16>
    %cst_21 = arith.constant dense<0.000000e+00> : vector<8x128xf32>
    %42 = tpu.matmul %41, %3, %cst_21 {dimension_numbers = #tpu.dot_dimension_numbers<[1], [0], [0], [1], [0, 0, 1, 1], [], []>} : vector<8x128xbf16>, vector<128x128xbf16>, vector<8x128xf32> -> vector<8x128xf32>
    %43 = arith.addf %40, %42 : vector<8x128xf32>
    %44 = math.tanh %43 : vector<8x128xf32>
    %45 = arith.index_cast %c3_i32 : i32 to index
    %c0_22 = arith.constant 0 : index
    %c0_23 = arith.constant 0 : index
    %46 = vector.load %arg3[%45, %c0_22, %c0_23] : memref<8x8x128xf32, #tpu.memory_space<vmem>>, vector<1x8x128xf32>
    %47 = vector.shape_cast %46 : vector<1x8x128xf32> to vector<8x128xf32>
    %48 = vector.shape_cast %44 : vector<8x128xf32> to vector<1x8x128xf32>
    tpu.vector_store %arg3[%45, %c0_22, %c0_23], %48 {strides = array<i32>} : memref<8x8x128xf32, #tpu.memory_space<vmem>>, vector<1x8x128xf32>,
    %c4_i32 = arith.constant 4 : i32
    %49 = arith.index_cast %c4_i32 : i32 to index
    %c0_24 = arith.constant 0 : index
    %c0_25 = arith.constant 0 : index
    %50 = vector.load %arg1[%49, %c0_24, %c0_25] : memref<8x8x128xf32, #tpu.memory_space<vmem>>, vector<1x8x128xf32>
    %51 = vector.shape_cast %50 : vector<1x8x128xf32> to vector<8x128xf32>
    %52 = arith.truncf %44 : vector<8x128xf32> to vector<8x128xbf16>
    %cst_26 = arith.constant dense<0.000000e+00> : vector<8x128xf32>
    %53 = tpu.matmul %52, %3, %cst_26 {dimension_numbers = #tpu.dot_dimension_numbers<[1], [0], [0], [1], [0, 0, 1, 1], [], []>} : vector<8x128xbf16>, vector<128x128xbf16>, vector<8x128xf32> -> vector<8x128xf32>
    %54 = arith.addf %51, %53 : vector<8x128xf32>
    %55 = math.tanh %54 : vector<8x128xf32>
    %56 = arith.index_cast %c4_i32 : i32 to index
    %c0_27 = arith.constant 0 : index
    %c0_28 = arith.constant 0 : index
    %57 = vector.load %arg3[%56, %c0_27, %c0_28] : memref<8x8x128xf32, #tpu.memory_space<vmem>>, vector<1x8x128xf32>
    %58 = vector.shape_cast %57 : vector<1x8x128xf32> to vector<8x128xf32>
    %59 = vector.shape_cast %55 : vector<8x128xf32> to vector<1x8x128xf32>
    tpu.vector_store %arg3[%56, %c0_27, %c0_28], %59 {strides = array<i32>} : memref<8x8x128xf32, #tpu.memory_space<vmem>>, vector<1x8x128xf32>,
    %c5_i32 = arith.constant 5 : i32
    %60 = arith.index_cast %c5_i32 : i32 to index
    %c0_29 = arith.constant 0 : index
    %c0_30 = arith.constant 0 : index
    %61 = vector.load %arg1[%60, %c0_29, %c0_30] : memref<8x8x128xf32, #tpu.memory_space<vmem>>, vector<1x8x128xf32>
    %62 = vector.shape_cast %61 : vector<1x8x128xf32> to vector<8x128xf32>
    %63 = arith.truncf %55 : vector<8x128xf32> to vector<8x128xbf16>
    %cst_31 = arith.constant dense<0.000000e+00> : vector<8x128xf32>
    %64 = tpu.matmul %63, %3, %cst_31 {dimension_numbers = #tpu.dot_dimension_numbers<[1], [0], [0], [1], [0, 0, 1, 1], [], []>} : vector<8x128xbf16>, vector<128x128xbf16>, vector<8x128xf32> -> vector<8x128xf32>
    %65 = arith.addf %62, %64 : vector<8x128xf32>
    %66 = math.tanh %65 : vector<8x128xf32>
    %67 = arith.index_cast %c5_i32 : i32 to index
    %c0_32 = arith.constant 0 : index
    %c0_33 = arith.constant 0 : index
    %68 = vector.load %arg3[%67, %c0_32, %c0_33] : memref<8x8x128xf32, #tpu.memory_space<vmem>>, vector<1x8x128xf32>
    %69 = vector.shape_cast %68 : vector<1x8x128xf32> to vector<8x128xf32>
    %70 = vector.shape_cast %66 : vector<8x128xf32> to vector<1x8x128xf32>
    tpu.vector_store %arg3[%67, %c0_32, %c0_33], %70 {strides = array<i32>} : memref<8x8x128xf32, #tpu.memory_space<vmem>>, vector<1x8x128xf32>,
    %c6_i32 = arith.constant 6 : i32
    %71 = arith.index_cast %c6_i32 : i32 to index
    %c0_34 = arith.constant 0 : index
    %c0_35 = arith.constant 0 : index
    %72 = vector.load %arg1[%71, %c0_34, %c0_35] : memref<8x8x128xf32, #tpu.memory_space<vmem>>, vector<1x8x128xf32>
    %73 = vector.shape_cast %72 : vector<1x8x128xf32> to vector<8x128xf32>
    %74 = arith.truncf %66 : vector<8x128xf32> to vector<8x128xbf16>
    %cst_36 = arith.constant dense<0.000000e+00> : vector<8x128xf32>
    %75 = tpu.matmul %74, %3, %cst_36 {dimension_numbers = #tpu.dot_dimension_numbers<[1], [0], [0], [1], [0, 0, 1, 1], [], []>} : vector<8x128xbf16>, vector<128x128xbf16>, vector<8x128xf32> -> vector<8x128xf32>
    %76 = arith.addf %73, %75 : vector<8x128xf32>
    %77 = math.tanh %76 : vector<8x128xf32>
    %78 = arith.index_cast %c6_i32 : i32 to index
    %c0_37 = arith.constant 0 : index
    %c0_38 = arith.constant 0 : index
    %79 = vector.load %arg3[%78, %c0_37, %c0_38] : memref<8x8x128xf32, #tpu.memory_space<vmem>>, vector<1x8x128xf32>
    %80 = vector.shape_cast %79 : vector<1x8x128xf32> to vector<8x128xf32>
    %81 = vector.shape_cast %77 : vector<8x128xf32> to vector<1x8x128xf32>
    tpu.vector_store %arg3[%78, %c0_37, %c0_38], %81 {strides = array<i32>} : memref<8x8x128xf32, #tpu.memory_space<vmem>>, vector<1x8x128xf32>,
    %c7_i32 = arith.constant 7 : i32
    %82 = arith.index_cast %c7_i32 : i32 to index
    %c0_39 = arith.constant 0 : index
    %c0_40 = arith.constant 0 : index
    %83 = vector.load %arg1[%82, %c0_39, %c0_40] : memref<8x8x128xf32, #tpu.memory_space<vmem>>, vector<1x8x128xf32>
    %84 = vector.shape_cast %83 : vector<1x8x128xf32> to vector<8x128xf32>
    %85 = arith.truncf %77 : vector<8x128xf32> to vector<8x128xbf16>
    %cst_41 = arith.constant dense<0.000000e+00> : vector<8x128xf32>
    %86 = tpu.matmul %85, %3, %cst_41 {dimension_numbers = #tpu.dot_dimension_numbers<[1], [0], [0], [1], [0, 0, 1, 1], [], []>} : vector<8x128xbf16>, vector<128x128xbf16>, vector<8x128xf32> -> vector<8x128xf32>
    %87 = arith.addf %84, %86 : vector<8x128xf32>
    %88 = math.tanh %87 : vector<8x128xf32>
    %89 = arith.index_cast %c7_i32 : i32 to index
    %c0_42 = arith.constant 0 : index
    %c0_43 = arith.constant 0 : index
    %90 = vector.load %arg3[%89, %c0_42, %c0_43] : memref<8x8x128xf32, #tpu.memory_space<vmem>>, vector<1x8x128xf32>
    %91 = vector.shape_cast %90 : vector<1x8x128xf32> to vector<8x128xf32>
    %92 = vector.shape_cast %88 : vector<8x128xf32> to vector<1x8x128xf32>
    tpu.vector_store %arg3[%89, %c0_42, %c0_43], %92 {strides = array<i32>} : memref<8x8x128xf32, #tpu.memory_space<vmem>>, vector<1x8x128xf32>,
    %c8_i32 = arith.constant 8 : i32
    %c0_44 = arith.constant 0 : index
    %c0_45 = arith.constant 0 : index
    %93 = vector.load %arg4[%c0_44, %c0_45] : memref<8x128xf32, #tpu.memory_space<vmem>>, vector<8x128xf32>
    tpu.vector_store %arg4[%c0_44, %c0_45], %88 {strides = array<i32>} : memref<8x128xf32, #tpu.memory_space<vmem>>, vector<8x128xf32>,
    return
  }
  func.func @transform_0(%arg0: i32) -> (i32, i32, i32) {
    %c0_i32 = arith.constant 0 : i32
    %c0_i32_0 = arith.constant 0 : i32
    %c0_i32_1 = arith.constant 0 : i32
    return %arg0, %c0_i32, %c0_i32_0 : i32, i32, i32
  }
  func.func @transform_1(%arg0: i32) -> (i32, i32) {
    %c0_i32 = arith.constant 0 : i32
    %c0_i32_0 = arith.constant 0 : i32
    %c0_i32_1 = arith.constant 0 : i32
    return %c0_i32, %c0_i32_0 : i32, i32
  }
  func.func @transform_2(%arg0: i32) -> (i32, i32, i32) {
    %c0_i32 = arith.constant 0 : i32
    %c0_i32_0 = arith.constant 0 : i32
    %c0_i32_1 = arith.constant 0 : i32
    return %arg0, %c0_i32, %c0_i32_0 : i32, i32, i32
  }
}

</mosaic_0001>

<llo_original>
// kernel: tpu_custom_call.1
$region0: #{tpu_custom_call.1}
  #allocation0 [shape = 'u32[]', space=smem, size = 0x4, offset = 0x4, fixed_abs, tag = 'smem constant byte address 0x4 - core index']
  #allocation1 [shape = 'u32[144,128]{1,0:T(1,128)}', space=vmem, size = 0x12000, scoped, tag = 'internal scratch']
  #allocation2 [shape = 'f32[8,128]{1,0:T(8,128)}', space=vmem, size = 0x1000, scoped, tag = 'scratch operand']
  %s0 = inlined_call_operand.hbm [shape: f32[8,8,128], index: 0, kind: input, shape index: {}]
  %s1 = inlined_call_operand.hbm [shape: bf16[128,128], index: 1, kind: input, shape index: {}]
  %s2 = inlined_call_operand.hbm [shape: f32[8,8,128], index: 2, kind: output, shape index: {}]
  %s3 = sld [smem:[#allocation0]]
  $region30: #{tpu_custom_call.1} parent=0
    _
  %s5 = ssub.s32 1, %s3
  %s6 = scalar_select 0, %s5, %s3
  $region1: #{tpu_custom_call.1} parent=0
    #allocation3 [shape = 'u8[32768]{0}', space=vmem, size = 0x8000, scoped, tag = 'input window, operand 0, single buffered']
    #allocation4 [shape = 's32[1]{0}', space=sflag, size = 0x4, scoped, tag = 'scoped memory for tpu_custom_call.1']
    #allocation5 [shape = 's32[1]{0}', space=sflag, size = 0x4, scoped, tag = 'scoped memory for tpu_custom_call.1']
    #allocation6 [shape = 'u8[32768]{0}', space=vmem, size = 0x8000, scoped, tag = 'input window, operand 1, single buffered']
    #allocation7 [shape = 's32[1]{0}', space=sflag, size = 0x4, scoped, tag = 'scoped memory for tpu_custom_call.1']
    #allocation8 [shape = 'u8[32768]{0}', space=vmem, size = 0x8000, scoped, tag = 'output window, operand 0, single buffered']
    %7 = vsyncpa [#allocation4], 0
    %8 = vsyncpa [#allocation7], 0
    %9 = vsyncpa [#allocation5], 0
    // Predicated region
    $region2: #{tpu_custom_call.1} parent=1 // pred_check
      _
    $region3: #{tpu_custom_call.1} parent=1 // pred_check_branch
      %11 = sbr.rel (0) target = $region5
    $region4: #{tpu_custom_call.1} parent=1 // pred_region
      %s13 = ssub.s32 1024, 1024
      %14 = vsyncadd [#allocation4], %s13
      %s15 = sshll.u32 [#allocation3], 4
      %s16 = int_to_ptr.vmem [resolvable:$true] %s15
      %21 = dma.hbm_to_vmem [thread:$0]  %s0, 1024, %s16, [#allocation4], 128, 128, 8
    $region5: #{tpu_custom_call.1} parent=1 // pred_fallthru
      _
    // Predicated region
    $region6: #{tpu_custom_call.1} parent=1 // pred_check
      _
    $region7: #{tpu_custom_call.1} parent=1 // pred_check_branch
      %23 = sbr.rel (0) target = $region9
    $region8: #{tpu_custom_call.1} parent=1 // pred_region
      %s25 = ssub.s32 1024, 1024
      %26 = vsyncadd [#allocation7], %s25
      %s27 = sshll.u32 [#allocation6], 4
      %s28 = int_to_ptr.vmem [resolvable:$true] %s27
      %33 = dma.hbm_to_vmem [thread:$0]  %s1, 1024, %s28, [#allocation7], 64, 64, 4
    $region9: #{tpu_custom_call.1} parent=1 // pred_fallthru
      _
    // Predicated region
    $region10: #{tpu_custom_call.1} parent=1 // pred_check
      _
    $region11: #{tpu_custom_call.1} parent=1 // pred_check_branch
      %35 = sbr.rel (0) target = $region13
    $region12: #{tpu_custom_call.1} parent=1 // pred_region
      %36 = dma.done [#allocation4], 1024
    $region13: #{tpu_custom_call.1} parent=1 // pred_fallthru
      _
    // Predicated region
    $region14: #{tpu_custom_call.1} parent=1 // pred_check
      _
    $region15: #{tpu_custom_call.1} parent=1 // pred_check_branch
      %38 = sbr.rel (0) target = $region17
    $region16: #{tpu_custom_call.1} parent=1 // pred_region
      %39 = dma.done [#allocation7], 1024
    $region17: #{tpu_custom_call.1} parent=1 // pred_fallthru
      _
    %p41 = scmp.eq.s32.totalorder 0, 0
    // Predicated region
    $region18: #{tpu_custom_call.1} parent=1 // pred_check
      %p42 = pneg %p41
    $region19: #{tpu_custom_call.1} parent=1 // pred_check_branch
      %44 = sbr.rel (%p42) target = $region21
    $region20: #{tpu_custom_call.1} parent=1 // pred_region
      %45 = vst [vmem:[#allocation2] sm:$0xff] 0.0
    $region21: #{tpu_custom_call.1} parent=1 // pred_fallthru
      _
    %v46 = vld [vmem:[#allocation6] sm:$0xf]
    %v47 = vld [vmem:[#allocation6 + $0x4] sm:$0xf]
    %v48 = vld [vmem:[#allocation6 + $0x8] sm:$0xf]
    %v49 = vld [vmem:[#allocation6 + $0xc] sm:$0xf]
    %v50 = vld [vmem:[#allocation6 + $0x10] sm:$0xf]
    %v51 = vld [vmem:[#allocation6 + $0x14] sm:$0xf]
    %v52 = vld [vmem:[#allocation6 + $0x18] sm:$0xf]
    %v53 = vld [vmem:[#allocation6 + $0x1c] sm:$0xf]
    %v54 = vld [vmem:[#allocation6 + $0x20] sm:$0xf]
    %v55 = vld [vmem:[#allocation6 + $0x24] sm:$0xf]
    %v56 = vld [vmem:[#allocation6 + $0x28] sm:$0xf]
    %v57 = vld [vmem:[#allocation6 + $0x2c] sm:$0xf]
    %v58 = vld [vmem:[#allocation6 + $0x30] sm:$0xf]
    %v59 = vld [vmem:[#allocation6 + $0x34] sm:$0xf]
    %v60 = vld [vmem:[#allocation6 + $0x38] sm:$0xf]
    %v61 = vld [vmem:[#allocation6 + $0x3c] sm:$0xf]
    %v62 = vld [vmem:[#allocation2] sm:$0xff]
    %v63 = vld [vmem:[#allocation3] sm:$0xff]
    %v64 = vpack.c.bf16 %v62, %v62
    %v81 = vunpack.c.l.b16 %v46
    %v82 = vunpack.c.l.b16 %v47
    %v83 = vunpack.c.l.b16 %v48
    %v84 = vunpack.c.l.b16 %v49
    %v85 = vunpack.c.l.b16 %v50
    %v86 = vunpack.c.l.b16 %v51
    %v87 = vunpack.c.l.b16 %v52
    %v88 = vunpack.c.l.b16 %v53
    %v89 = vunpack.c.l.b16 %v54
    %v90 = vunpack.c.l.b16 %v55
    %v91 = vunpack.c.l.b16 %v56
    %v92 = vunpack.c.l.b16 %v57
    %v93 = vunpack.c.l.b16 %v58
    %v94 = vunpack.c.l.b16 %v59
    %v95 = vunpack.c.l.b16 %v60
    %v96 = vunpack.c.l.b16 %v61
    %v97 = vpack.c.b16 %v82, %v81
    %v98 = vpack.c.b16 %v84, %v83
    %v99 = vpack.c.b16 %v86, %v85
    %v100 = vpack.c.b16 %v88, %v87
    %v101 = vpack.c.b16 %v90, %v89
    %v102 = vpack.c.b16 %v92, %v91
    %v103 = vpack.c.b16 %v94, %v93
    %v104 = vpack.c.b16 %v96, %v95
    %113 = vmatprep.subr.bf16.mxu0 0
    %114 = vmatpush1.bf16.msra.mxu0 %v97
    %115 = vmatprep.subr.bf16.mxu0 0
    %116 = vmatpush1.bf16.msra.mxu0 %v98
    %117 = vmatprep.subr.bf16.mxu0 0
    %118 = vmatpush1.bf16.msra.mxu0 %v99
    %119 = vmatprep.subr.bf16.mxu0 0
    %120 = vmatpush1.bf16.msra.mxu0 %v100
    %121 = vmatprep.subr.bf16.mxu0 0
    %122 = vmatpush1.bf16.msra.mxu0 %v101
    %123 = vmatprep.subr.bf16.mxu0 0
    %124 = vmatpush1.bf16.msra.mxu0 %v102
    %125 = vmatprep.subr.bf16.mxu0 0
    %126 = vmatpush1.bf16.msra.mxu0 %v103
    %127 = vmatprep.subr.bf16.mxu0 0
    %128 = vmatpush1.bf16.msra.mxu0 %v104
    %129 = vmatprep.subr.bf16.mxu0 0
    %130 = vmatpush1.bf16.msra.mxu0 0
    %131 = vmatprep.subr.bf16.mxu0 0
    %132 = vmatpush1.bf16.msra.mxu0 0
    %133 = vmatprep.subr.bf16.mxu0 0
    %134 = vmatpush1.bf16.msra.mxu0 0
    %135 = vmatprep.subr.bf16.mxu0 0
    %136 = vmatpush1.bf16.msra.mxu0 0
    %137 = vmatprep.subr.bf16.mxu0 0
    %138 = vmatpush1.bf16.msra.mxu0 0
    %139 = vmatprep.subr.bf16.mxu0 0
    %140 = vmatpush1.bf16.msra.mxu0 0
    %141 = vmatprep.subr.bf16.mxu0 0
    %142 = vmatpush1.bf16.msra.mxu0 0
    %143 = vmatprep.subr.bf16.mxu0 0
    %144 = vmatpush1.bf16.msra.mxu0 0
    %145 = vmatprep.mubr.bf16.mxu0 0
    %146 = vmatmul.mubr.bf16.gmra.mrb[0].mxu0 %v64
    %v147 = vpop.f32.mrb[0].mxu0
    %v148 = vadd.f32 0.0, %v147
    %v149 = vpop.f32.mrb[0].mxu0
    %v150 = vpop.f32.mrb[0].mxu0
    %v151 = vpop.f32.mrb[0].mxu0
    %152 = vdwg.mxu0
    %v153 = vadd.f32 %v63, %v148
    %v154 = vtanh.pop %v153
    %155 = vst [vmem:[#allocation8] sm:$0xff] %v154
    %s156 = scalar_lea.vmem [#allocation3], 8
    %v157 = vld [vmem:[%s156] sm:$0xff]
    %v158 = vpack.c.bf16 %v154, %v154
    %159 = vmatprep.subr.bf16.mxu0 0
    %160 = vmatpush1.bf16.msra.mxu0 %v97
    %161 = vmatprep.subr.bf16.mxu0 0
    %162 = vmatpush1.bf16.msra.mxu0 %v98
    %163 = vmatprep.subr.bf16.mxu0 0
    %164 = vmatpush1.bf16.msra.mxu0 %v99
    %165 = vmatprep.subr.bf16.mxu0 0
    %166 = vmatpush1.bf16.msra.mxu0 %v100
    %167 = vmatprep.subr.bf16.mxu0 0
    %168 = vmatpush1.bf16.msra.mxu0 %v101
    %169 = vmatprep.subr.bf16.mxu0 0
    %170 = vmatpush1.bf16.msra.mxu0 %v102
    %171 = vmatprep.subr.bf16.mxu0 0
    %172 = vmatpush1.bf16.msra.mxu0 %v103
    %173 = vmatprep.subr.bf16.mxu0 0
    %174 = vmatpush1.bf16.msra.mxu0 %v104
    %175 = vmatprep.subr.bf16.mxu0 0
    %176 = vmatpush1.bf16.msra.mxu0 0
    %177 = vmatprep.subr.bf16.mxu0 0
    %178 = vmatpush1.bf16.msra.mxu0 0
    %179 = vmatprep.subr.bf16.mxu0 0
    %180 = vmatpush1.bf16.msra.mxu0 0
    %181 = vmatprep.subr.bf16.mxu0 0
    %182 = vmatpush1.bf16.msra.mxu0 0
    %183 = vmatprep.subr.bf16.mxu0 0
    %184 = vmatpush1.bf16.msra.mxu0 0
    %185 = vmatprep.subr.bf16.mxu0 0
    %186 = vmatpush1.bf16.msra.mxu0 0
    %187 = vmatprep.subr.bf16.mxu0 0
    %188 = vmatpush1.bf16.msra.mxu0 0
    %189 = vmatprep.subr.bf16.mxu0 0
    %190 = vmatpush1.bf16.msra.mxu0 0
    %191 = vmatprep.mubr.bf16.mxu0 0
    %192 = vmatmul.mubr.bf16.gmra.mrb[0].mxu0 %v158
    %v193 = vpop.f32.mrb[0].mxu0
    %v194 = vadd.f32 0.0, %v193
    %v195 = vpop.f32.mrb[0].mxu0
    %v196 = vpop.f32.mrb[0].mxu0
    %v197 = vpop.f32.mrb[0].mxu0
    %198 = vdwg.mxu0
    %v199 = vadd.f32 %v157, %v194
    %v200 = vtanh.pop %v199
    %s201 = scalar_lea.vmem [#allocation8], 8
    %202 = vst [vmem:[%s201] sm:$0xff] %v200
    %s203 = scalar_lea.vmem [#allocation3], 16
    %v204 = vld [vmem:[%s203] sm:$0xff]
    %v205 = vpack.c.bf16 %v200, %v200
    %206 = vmatprep.subr.bf16.mxu0 0
    %207 = vmatpush1.bf16.msra.mxu0 %v97
    %208 = vmatprep.subr.bf16.mxu0 0
    %209 = vmatpush1.bf16.msra.mxu0 %v98
    %210 = vmatprep.subr.bf16.mxu0 0
    %211 = vmatpush1.bf16.msra.mxu0 %v99
    %212 = vmatprep.subr.bf16.mxu0 0
    %213 = vmatpush1.bf16.msra.mxu0 %v100
    %214 = vmatprep.subr.bf16.mxu0 0
    %215 = vmatpush1.bf16.msra.mxu0 %v101
    %216 = vmatprep.subr.bf16.mxu0 0
    %217 = vmatpush1.bf16.msra.mxu0 %v102
    %218 = vmatprep.subr.bf16.mxu0 0
    %219 = vmatpush1.bf16.msra.mxu0 %v103
    %220 = vmatprep.subr.bf16.mxu0 0
    %221 = vmatpush1.bf16.msra.mxu0 %v104
    %222 = vmatprep.subr.bf16.mxu0 0
    %223 = vmatpush1.bf16.msra.mxu0 0
    %224 = vmatprep.subr.bf16.mxu0 0
    %225 = vmatpush1.bf16.msra.mxu0 0
    %226 = vmatprep.subr.bf16.mxu0 0
    %227 = vmatpush1.bf16.msra.mxu0 0
    %228 = vmatprep.subr.bf16.mxu0 0
    %229 = vmatpush1.bf16.msra.mxu0 0
    %230 = vmatprep.subr.bf16.mxu0 0
    %231 = vmatpush1.bf16.msra.mxu0 0
    %232 = vmatprep.subr.bf16.mxu0 0
    %233 = vmatpush1.bf16.msra.mxu0 0
    %234 = vmatprep.subr.bf16.mxu0 0
    %235 = vmatpush1.bf16.msra.mxu0 0
    %236 = vmatprep.subr.bf16.mxu0 0
    %237 = vmatpush1.bf16.msra.mxu0 0
    %238 = vmatprep.mubr.bf16.mxu0 0
    %239 = vmatmul.mubr.bf16.gmra.mrb[0].mxu0 %v205
    %v240 = vpop.f32.mrb[0].mxu0
    %v241 = vadd.f32 0.0, %v240
    %v242 = vpop.f32.mrb[0].mxu0
    %v243 = vpop.f32.mrb[0].mxu0
    %v244 = vpop.f32.mrb[0].mxu0
    %245 = vdwg.mxu0
    %v246 = vadd.f32 %v204, %v241
    %v247 = vtanh.pop %v246
    %s248 = scalar_lea.vmem [#allocation8], 16
    %249 = vst [vmem:[%s248] sm:$0xff] %v247
    %s250 = scalar_lea.vmem [#allocation3], 24
    %v251 = vld [vmem:[%s250] sm:$0xff]
    %v252 = vpack.c.bf16 %v247, %v247
    %253 = vmatprep.subr.bf16.mxu0 0
    %254 = vmatpush1.bf16.msra.mxu0 %v97
    %255 = vmatprep.subr.bf16.mxu0 0
    %256 = vmatpush1.bf16.msra.mxu0 %v98
    %257 = vmatprep.subr.bf16.mxu0 0
    %258 = vmatpush1.bf16.msra.mxu0 %v99
    %259 = vmatprep.subr.bf16.mxu0 0
    %260 = vmatpush1.bf16.msra.mxu0 %v100
    %261 = vmatprep.subr.bf16.mxu0 0
    %262 = vmatpush1.bf16.msra.mxu0 %v101
    %263 = vmatprep.subr.bf16.mxu0 0
    %264 = vmatpush1.bf16.msra.mxu0 %v102
    %265 = vmatprep.subr.bf16.mxu0 0
    %266 = vmatpush1.bf16.msra.mxu0 %v103
    %267 = vmatprep.subr.bf16.mxu0 0
    %268 = vmatpush1.bf16.msra.mxu0 %v104
    %269 = vmatprep.subr.bf16.mxu0 0
    %270 = vmatpush1.bf16.msra.mxu0 0
    %271 = vmatprep.subr.bf16.mxu0 0
    %272 = vmatpush1.bf16.msra.mxu0 0
    %273 = vmatprep.subr.bf16.mxu0 0
    %274 = vmatpush1.bf16.msra.mxu0 0
    %275 = vmatprep.subr.bf16.mxu0 0
    %276 = vmatpush1.bf16.msra.mxu0 0
    %277 = vmatprep.subr.bf16.mxu0 0
    %278 = vmatpush1.bf16.msra.mxu0 0
    %279 = vmatprep.subr.bf16.mxu0 0
    %280 = vmatpush1.bf16.msra.mxu0 0
    %281 = vmatprep.subr.bf16.mxu0 0
    %282 = vmatpush1.bf16.msra.mxu0 0
    %283 = vmatprep.subr.bf16.mxu0 0
    %284 = vmatpush1.bf16.msra.mxu0 0
    %285 = vmatprep.mubr.bf16.mxu0 0
    %286 = vmatmul.mubr.bf16.gmra.mrb[0].mxu0 %v252
    %v287 = vpop.f32.mrb[0].mxu0
    %v288 = vadd.f32 0.0, %v287
    %v289 = vpop.f32.mrb[0].mxu0
    %v290 = vpop.f32.mrb[0].mxu0
    %v291 = vpop.f32.mrb[0].mxu0
    %292 = vdwg.mxu0
    %v293 = vadd.f32 %v251, %v288
    %v294 = vtanh.pop %v293
    %s295 = scalar_lea.vmem [#allocation8], 24
    %296 = vst [vmem:[%s295] sm:$0xff] %v294
    %s297 = scalar_lea.vmem [#allocation3], 32
    %v298 = vld [vmem:[%s297] sm:$0xff]
    %v299 = vpack.c.bf16 %v294, %v294
    %300 = vmatprep.subr.bf16.mxu0 0
    %301 = vmatpush1.bf16.msra.mxu0 %v97
    %302 = vmatprep.subr.bf16.mxu0 0
    %303 = vmatpush1.bf16.msra.mxu0 %v98
    %304 = vmatprep.subr.bf16.mxu0 0
    %305 = vmatpush1.bf16.msra.mxu0 %v99
    %306 = vmatprep.subr.bf16.mxu0 0
    %307 = vmatpush1.bf16.msra.mxu0 %v100
    %308 = vmatprep.subr.bf16.mxu0 0
    %309 = vmatpush1.bf16.msra.mxu0 %v101
    %310 = vmatprep.subr.bf16.mxu0 0
    %311 = vmatpush1.bf16.msra.mxu0 %v102
    %312 = vmatprep.subr.bf16.mxu0 0
    %313 = vmatpush1.bf16.msra.mxu0 %v103
    %314 = vmatprep.subr.bf16.mxu0 0
    %315 = vmatpush1.bf16.msra.mxu0 %v104
    %316 = vmatprep.subr.bf16.mxu0 0
    %317 = vmatpush1.bf16.msra.mxu0 0
    %318 = vmatprep.subr.bf16.mxu0 0
    %319 = vmatpush1.bf16.msra.mxu0 0
    %320 = vmatprep.subr.bf16.mxu0 0
    %321 = vmatpush1.bf16.msra.mxu0 0
    %322 = vmatprep.subr.bf16.mxu0 0
    %323 = vmatpush1.bf16.msra.mxu0 0
    %324 = vmatprep.subr.bf16.mxu0 0
    %325 = vmatpush1.bf16.msra.mxu0 0
    %326 = vmatprep.subr.bf16.mxu0 0
    %327 = vmatpush1.bf16.msra.mxu0 0
    %328 = vmatprep.subr.bf16.mxu0 0
    %329 = vmatpush1.bf16.msra.mxu0 0
    %330 = vmatprep.subr.bf16.mxu0 0
    %331 = vmatpush1.bf16.msra.mxu0 0
    %332 = vmatprep.mubr.bf16.mxu0 0
    %333 = vmatmul.mubr.bf16.gmra.mrb[0].mxu0 %v299
    %v334 = vpop.f32.mrb[0].mxu0
    %v335 = vadd.f32 0.0, %v334
    %v336 = vpop.f32.mrb[0].mxu0
    %v337 = vpop.f32.mrb[0].mxu0
    %v338 = vpop.f32.mrb[0].mxu0
    %339 = vdwg.mxu0
    %v340 = vadd.f32 %v298, %v335
    %v341 = vtanh.pop %v340
    %s342 = scalar_lea.vmem [#allocation8], 32
    %343 = vst [vmem:[%s342] sm:$0xff] %v341
    %s344 = scalar_lea.vmem [#allocation3], 40
    %v345 = vld [vmem:[%s344] sm:$0xff]
    %v346 = vpack.c.bf16 %v341, %v341
    %347 = vmatprep.subr.bf16.mxu0 0
    %348 = vmatpush1.bf16.msra.mxu0 %v97
    %349 = vmatprep.subr.bf16.mxu0 0
    %350 = vmatpush1.bf16.msra.mxu0 %v98
    %351 = vmatprep.subr.bf16.mxu0 0
    %352 = vmatpush1.bf16.msra.mxu0 %v99
    %353 = vmatprep.subr.bf16.mxu0 0
    %354 = vmatpush1.bf16.msra.mxu0 %v100
    %355 = vmatprep.subr.bf16.mxu0 0
    %356 = vmatpush1.bf16.msra.mxu0 %v101
    %357 = vmatprep.subr.bf16.mxu0 0
    %358 = vmatpush1.bf16.msra.mxu0 %v102
    %359 = vmatprep.subr.bf16.mxu0 0
    %360 = vmatpush1.bf16.msra.mxu0 %v103
    %361 = vmatprep.subr.bf16.mxu0 0
    %362 = vmatpush1.bf16.msra.mxu0 %v104
    %363 = vmatprep.subr.bf16.mxu0 0
    %364 = vmatpush1.bf16.msra.mxu0 0
    %365 = vmatprep.subr.bf16.mxu0 0
    %366 = vmatpush1.bf16.msra.mxu0 0
    %367 = vmatprep.subr.bf16.mxu0 0
    %368 = vmatpush1.bf16.msra.mxu0 0
    %369 = vmatprep.subr.bf16.mxu0 0
    %370 = vmatpush1.bf16.msra.mxu0 0
    %371 = vmatprep.subr.bf16.mxu0 0
    %372 = vmatpush1.bf16.msra.mxu0 0
    %373 = vmatprep.subr.bf16.mxu0 0
    %374 = vmatpush1.bf16.msra.mxu0 0
    %375 = vmatprep.subr.bf16.mxu0 0
    %376 = vmatpush1.bf16.msra.mxu0 0
    %377 = vmatprep.subr.bf16.mxu0 0
    %378 = vmatpush1.bf16.msra.mxu0 0
    %379 = vmatprep.mubr.bf16.mxu0 0
    %380 = vmatmul.mubr.bf16.gmra.mrb[0].mxu0 %v346
    %v381 = vpop.f32.mrb[0].mxu0
    %v382 = vadd.f32 0.0, %v381
    %v383 = vpop.f32.mrb[0].mxu0
    %v384 = vpop.f32.mrb[0].mxu0
    %v385 = vpop.f32.mrb[0].mxu0
    %386 = vdwg.mxu0
    %v387 = vadd.f32 %v345, %v382
    %v388 = vtanh.pop %v387
    %s389 = scalar_lea.vmem [#allocation8], 40
    %390 = vst [vmem:[%s389] sm:$0xff] %v388
    %s391 = scalar_lea.vmem [#allocation3], 48
    %v392 = vld [vmem:[%s391] sm:$0xff]
    %v393 = vpack.c.bf16 %v388, %v388
    %394 = vmatprep.subr.bf16.mxu0 0
    %395 = vmatpush1.bf16.msra.mxu0 %v97
    %396 = vmatprep.subr.bf16.mxu0 0
    %397 = vmatpush1.bf16.msra.mxu0 %v98
    %398 = vmatprep.subr.bf16.mxu0 0
    %399 = vmatpush1.bf16.msra.mxu0 %v99
    %400 = vmatprep.subr.bf16.mxu0 0
    %401 = vmatpush1.bf16.msra.mxu0 %v100
    %402 = vmatprep.subr.bf16.mxu0 0
    %403 = vmatpush1.bf16.msra.mxu0 %v101
    %404 = vmatprep.subr.bf16.mxu0 0
    %405 = vmatpush1.bf16.msra.mxu0 %v102
    %406 = vmatprep.subr.bf16.mxu0 0
    %407 = vmatpush1.bf16.msra.mxu0 %v103
    %408 = vmatprep.subr.bf16.mxu0 0
    %409 = vmatpush1.bf16.msra.mxu0 %v104
    %410 = vmatprep.subr.bf16.mxu0 0
    %411 = vmatpush1.bf16.msra.mxu0 0
    %412 = vmatprep.subr.bf16.mxu0 0
    %413 = vmatpush1.bf16.msra.mxu0 0
    %414 = vmatprep.subr.bf16.mxu0 0
    %415 = vmatpush1.bf16.msra.mxu0 0
    %416 = vmatprep.subr.bf16.mxu0 0
    %417 = vmatpush1.bf16.msra.mxu0 0
    %418 = vmatprep.subr.bf16.mxu0 0
    %419 = vmatpush1.bf16.msra.mxu0 0
    %420 = vmatprep.subr.bf16.mxu0 0
    %421 = vmatpush1.bf16.msra.mxu0 0
    %422 = vmatprep.subr.bf16.mxu0 0
    %423 = vmatpush1.bf16.msra.mxu0 0
    %424 = vmatprep.subr.bf16.mxu0 0
    %425 = vmatpush1.bf16.msra.mxu0 0
    %426 = vmatprep.mubr.bf16.mxu0 0
    %427 = vmatmul.mubr.bf16.gmra.mrb[0].mxu0 %v393
    %v428 = vpop.f32.mrb[0].mxu0
    %v429 = vadd.f32 0.0, %v428
    %v430 = vpop.f32.mrb[0].mxu0
    %v431 = vpop.f32.mrb[0].mxu0
    %v432 = vpop.f32.mrb[0].mxu0
    %433 = vdwg.mxu0
    %v434 = vadd.f32 %v392, %v429
    %v435 = vtanh.pop %v434
    %s436 = scalar_lea.vmem [#allocation8], 48
    %437 = vst [vmem:[%s436] sm:$0xff] %v435
    %s438 = scalar_lea.vmem [#allocation3], 56
    %v439 = vld [vmem:[%s438] sm:$0xff]
    %v440 = vpack.c.bf16 %v435, %v435
    %441 = vmatprep.subr.bf16.mxu0 0
    %442 = vmatpush1.bf16.msra.mxu0 %v97
    %443 = vmatprep.subr.bf16.mxu0 0
    %444 = vmatpush1.bf16.msra.mxu0 %v98
    %445 = vmatprep.subr.bf16.mxu0 0
    %446 = vmatpush1.bf16.msra.mxu0 %v99
    %447 = vmatprep.subr.bf16.mxu0 0
    %448 = vmatpush1.bf16.msra.mxu0 %v100
    %449 = vmatprep.subr.bf16.mxu0 0
    %450 = vmatpush1.bf16.msra.mxu0 %v101
    %451 = vmatprep.subr.bf16.mxu0 0
    %452 = vmatpush1.bf16.msra.mxu0 %v102
    %453 = vmatprep.subr.bf16.mxu0 0
    %454 = vmatpush1.bf16.msra.mxu0 %v103
    %455 = vmatprep.subr.bf16.mxu0 0
    %456 = vmatpush1.bf16.msra.mxu0 %v104
    %457 = vmatprep.subr.bf16.mxu0 0
    %458 = vmatpush1.bf16.msra.mxu0 0
    %459 = vmatprep.subr.bf16.mxu0 0
    %460 = vmatpush1.bf16.msra.mxu0 0
    %461 = vmatprep.subr.bf16.mxu0 0
    %462 = vmatpush1.bf16.msra.mxu0 0
    %463 = vmatprep.subr.bf16.mxu0 0
    %464 = vmatpush1.bf16.msra.mxu0 0
    %465 = vmatprep.subr.bf16.mxu0 0
    %466 = vmatpush1.bf16.msra.mxu0 0
    %467 = vmatprep.subr.bf16.mxu0 0
    %468 = vmatpush1.bf16.msra.mxu0 0
    %469 = vmatprep.subr.bf16.mxu0 0
    %470 = vmatpush1.bf16.msra.mxu0 0
    %471 = vmatprep.subr.bf16.mxu0 0
    %472 = vmatpush1.bf16.msra.mxu0 0
    %473 = vmatprep.mubr.bf16.mxu0 0
    %474 = vmatmul.mubr.bf16.gmra.mrb[0].mxu0 %v440
    %v475 = vpop.f32.mrb[0].mxu0
    %v476 = vadd.f32 0.0, %v475
    %v477 = vpop.f32.mrb[0].mxu0
    %v478 = vpop.f32.mrb[0].mxu0
    %v479 = vpop.f32.mrb[0].mxu0
    %480 = vdwg.mxu0
    %v481 = vadd.f32 %v439, %v476
    %v482 = vtanh.pop %v481
    %s483 = scalar_lea.vmem [#allocation8], 56
    %484 = vst [vmem:[%s483] sm:$0xff] %v482
    %485 = vst [vmem:[#allocation2] sm:$0xff] %v482
    // Predicated region
    $region22: #{tpu_custom_call.1} parent=1 // pred_check
      _
    $region23: #{tpu_custom_call.1} parent=1 // pred_check_branch
      %487 = sbr.rel (0) target = $region25
    $region24: #{tpu_custom_call.1} parent=1 // pred_region
      %s489 = ssub.s32 1024, 1024
      %490 = vsyncadd [#allocation5], %s489
      %s491 = sshll.u32 [#allocation8], 4
      %s492 = int_to_ptr.vmem [resolvable:$true] %s491
      %497 = dma.vmem_to_hbm [thread:$0]  %s492, 1024, %s2, [#allocation5], 128, 128, 8
    $region25: #{tpu_custom_call.1} parent=1 // pred_fallthru
      _
    // Predicated region
    $region26: #{tpu_custom_call.1} parent=1 // pred_check
      _
    $region27: #{tpu_custom_call.1} parent=1 // pred_check_branch
      %499 = sbr.rel (0) target = $region29
    $region28: #{tpu_custom_call.1} parent=1 // pred_region
      %500 = dma.done [#allocation5], 1024
    $region29: #{tpu_custom_call.1} parent=1 // pred_fallthru
      _
    %501 = vsyncpa [#allocation4], 1
    %502 = vsyncpa [#allocation7], 1
    %503 = vsyncpa [#allocation5], 1

</llo_original>
